<compile_context>
chip_gen: v5e
topology: v5e:2x2
jax: 0.10.0
libtpu: 0.0.40
codegen_flags: <defaults>
</compile_context>

<pallas_src>
import jax
import jax.numpy as jnp
from jax import lax
from jax.experimental import pallas as pl
from jax.experimental.pallas import tpu as pltpu


def _gru_linear_kernel(x_ref, h0_ref, wi_ref, wh_ref, bi_ref, bhn_ref,
                       wout_ref, bout_ref,
                       out_ref, hT_ref):
    # x_ref   : (B, T, I)  batch-first input
    # h0_ref  : (B, H)
    # wi_ref  : (I, 3H)    fused input-side gate weights, columns [r | z | n]
    # wh_ref  : (H, 3H)    fused hidden-side gate weights, columns [r | z | n]
    # bi_ref  : (1, 3H)    [b_ir+b_hr | b_iz+b_hz | b_in]
    # bhn_ref : (1, H)     b_hn (must stay inside r * (...), so kept separate)
    # wout_ref: (H, I), bout_ref: (1, I)
    # out_ref : (B, T, I), hT_ref: (B, H)
    B, T, I = x_ref.shape
    H = h0_ref.shape[1]
    H3 = 3 * H

    # ---- 1) all input-side projections in one matmul, off the critical path.
    #         Kept live as a value (tiny: ~2 vregs at these shapes); no scratch.
    x_bf = x_ref[...].reshape(B * T, I).astype(jnp.bfloat16)
    wi_bf = wi_ref[...].astype(jnp.bfloat16)
    xg = jnp.dot(x_bf, wi_bf, preferred_element_type=jnp.float32) + bi_ref[...]
    xg = xg.reshape(B, T, H3)                                       # (B, T, 3H) f32

    wh_bf = wh_ref[...].astype(jnp.bfloat16)                        # (H, 3H)
    bhn = jnp.broadcast_to(bhn_ref[...], (B, H))                    # hoisted broadcast

    # ---- 2) serial recurrence, fully unrolled (static T), one fused
    #         hidden-side bf16 matmul per step; gate math & carried h in f32.
    h = h0_ref[...]                                                 # (B, H) f32
    hs = []
    for t in range(T):
        gx = xg[:, t, :]                                            # static slice (B, 3H)
        gh = jnp.dot(h.astype(jnp.bfloat16), wh_bf,
                     preferred_element_type=jnp.float32)            # (B, 3H)
        # fused r/z sigmoid: one EUP push over the [r|z] block
        rz = jax.nn.sigmoid(gx[:, :2 * H] + gh[:, :2 * H])          # (B, 2H)
        r = rz[:, :H]
        z = rz[:, H:]
        n = jnp.tanh(gx[:, 2 * H:] + r * (gh[:, 2 * H:] + bhn))
        h = (1.0 - z) * n + z * h                                   # (B, H) f32
        hs.append(h)

    hT_ref[...] = h

    # ---- 3) output projection once over all (t, b) rows, single store.
    hseq = jnp.stack(hs, axis=0).reshape(T * B, H)                  # (T*B, H) f32
    y = jnp.dot(hseq.astype(jnp.bfloat16), wout_ref[...].astype(jnp.bfloat16),
                preferred_element_type=jnp.float32) + bout_ref[...]  # (T*B, I)
    y = y.reshape(T, B, I)
    out_ref[...] = jnp.transpose(y, (1, 0, 2))                      # (B, T, I), one store


def encoder_rnn_numerical(x, hidden, params):
    """Pallas forward of EncoderRNNNumerical.

    x: (B, T, I) float32 (batch_first, like nn.GRU(batch_first=True)),
    hidden: (1, B, H) float32.
    Returns (output (B, T, I), hidden (1, B, H)).
    """
    B, T, I = x.shape
    H = hidden.shape[-1]
    h0 = hidden[0]                                                  # (B, H)

    inputs = (x, h0,
              params["w_i"], params["w_h"], params["b_i"], params["b_hn"],
              params["w_out"], params["b_out"])

    out, hT = pl.pallas_call(
        _gru_linear_kernel,
        out_shape=(jax.ShapeDtypeStruct((B, T, I), jnp.float32),
                   jax.ShapeDtypeStruct((B, H), jnp.float32)),
        in_specs=[pl.BlockSpec(memory_space=pltpu.MemorySpace.VMEM)
                  for _ in range(len(inputs))],
        out_specs=(pl.BlockSpec(memory_space=pltpu.MemorySpace.VMEM),
                   pl.BlockSpec(memory_space=pltpu.MemorySpace.VMEM)),
    )(*inputs)

    return out, hT[None]


def init_params(key, input_size, hidden_size):
    """Deterministic init mimicking PyTorch's uniform(-1/sqrt(H), 1/sqrt(H))."""
    H, I = hidden_size, input_size
    k = 1.0 / jnp.sqrt(jnp.float32(H))
    ks = jax.random.split(key, 6)
    w_ih = jax.random.uniform(ks[0], (3 * H, I), jnp.float32, -k, k)   # rows: [r; z; n]
    w_hh = jax.random.uniform(ks[1], (3 * H, H), jnp.float32, -k, k)
    b_ih = jax.random.uniform(ks[2], (3 * H,), jnp.float32, -k, k)
    b_hh = jax.random.uniform(ks[3], (3 * H,), jnp.float32, -k, k)
    w_out = jax.random.uniform(ks[4], (I, H), jnp.float32, -k, k)
    b_out = jax.random.uniform(ks[5], (I,), jnp.float32, -k, k)

    b_i = jnp.concatenate([b_ih[0:H] + b_hh[0:H],          # r: b_ir + b_hr folded
                           b_ih[H:2 * H] + b_hh[H:2 * H],  # z: b_iz + b_hz folded
                           b_ih[2 * H:]],                  # n: b_in only
                          axis=0).reshape(1, 3 * H)

    return {
        "w_i": w_ih.T,                        # (I, 3H), column blocks [r | z | n]
        "w_h": w_hh.T,                        # (H, 3H)
        "b_i": b_i,                           # (1, 3H)
        "b_hn": b_hh[2 * H:].reshape(1, H),   # (1, H)
        "w_out": w_out.T,                     # (H, I)
        "b_out": b_out.reshape(1, I),         # (1, I)
    }


def reference_forward(x, hidden, params):
    """Pure-JAX f32 reference (same GRU equations as torch.nn.GRU)."""
    H = hidden.shape[-1]
    h0 = hidden[0]
    w_i, w_h = params["w_i"], params["w_h"]
    b_i, b_hn = params["b_i"], params["b_hn"]

    def step(h, x_t):
        gx = x_t @ w_i + b_i
        gh = h @ w_h
        r = jax.nn.sigmoid(gx[:, 0:H] + gh[:, 0:H])
        z = jax.nn.sigmoid(gx[:, H:2 * H] + gh[:, H:2 * H])
        n = jnp.tanh(gx[:, 2 * H:] + r * (gh[:, 2 * H:] + b_hn))
        h_new = (1.0 - z) * n + z * h
        y = h_new @ params["w_out"] + params["b_out"]
        return h_new, y

    h_last, ys = lax.scan(step, h0, jnp.transpose(x, (1, 0, 2)))
    return jnp.transpose(ys, (1, 0, 2)), h_last[None]


if __name__ == "__main__":
    B, T, I, H = 2, 8, 4, 32   # batch, seq, input_size, hidden_size

    key = jax.random.PRNGKey(0)
    k_param, k_x = jax.random.split(key)
    params = init_params(k_param, I, H)

    x = jax.random.normal(k_x, (B, T, I), jnp.float32)
    hidden0 = jnp.zeros((1, B, H), jnp.float32)   # like initHidden (broadcast over batch)

    out, hT = encoder_rnn_numerical(x, hidden0, params)
    out, hT = jax.block_until_ready((out, hT))

    out_ref, hT_ref = reference_forward(x, hidden0, params)
    assert out.shape == (B, T, I) and hT.shape == (1, B, H)
    # bf16 MXU operands with f32 accumulation -> validate at a bf16-appropriate tolerance
    assert jnp.allclose(out, out_ref, atol=1e-2, rtol=1e-2)
    assert jnp.allclose(hT, hT_ref, atol=1e-2, rtol=1e-2)

    print("KERNEL_OK")
</pallas_src>

<mosaic_0001>
module attributes {stable_mosaic.version = 11 : i64} {
  func.func @_gru_linear_kernel(%arg0: memref<2x8x4xf32, #tpu.memory_space<vmem>>, %arg1: memref<2x32xf32, #tpu.memory_space<vmem>>, %arg2: memref<4x96xf32, #tpu.memory_space<vmem>>, %arg3: memref<32x96xf32, #tpu.memory_space<vmem>>, %arg4: memref<1x96xf32, #tpu.memory_space<vmem>>, %arg5: memref<1x32xf32, #tpu.memory_space<vmem>>, %arg6: memref<32x4xf32, #tpu.memory_space<vmem>>, %arg7: memref<1x4xf32, #tpu.memory_space<vmem>>, %arg8: memref<2x8x4xf32, #tpu.memory_space<vmem>>, %arg9: memref<2x32xf32, #tpu.memory_space<vmem>>) attributes {dimension_semantics = [], scalar_prefetch = 0 : i64, scratch_operands = 0 : i64, tpu.core_type = #tpu.core_type<tc>} {
    %c0 = arith.constant 0 : index
    %c0_0 = arith.constant 0 : index
    %c0_1 = arith.constant 0 : index
    %0 = vector.load %arg0[%c0, %c0_0, %c0_1] : memref<2x8x4xf32, #tpu.memory_space<vmem>>, vector<2x8x4xf32>
    %1 = vector.shape_cast %0 : vector<2x8x4xf32> to vector<16x4xf32>
    %2 = arith.truncf %1 : vector<16x4xf32> to vector<16x4xbf16>
    %c0_2 = arith.constant 0 : index
    %c0_3 = arith.constant 0 : index
    %3 = vector.load %arg2[%c0_2, %c0_3] : memref<4x96xf32, #tpu.memory_space<vmem>>, vector<4x96xf32>
    %4 = arith.truncf %3 : vector<4x96xf32> to vector<4x96xbf16>
    %cst = arith.constant dense<0.000000e+00> : vector<16x96xf32>
    %5 = tpu.matmul %2, %4, %cst {dimension_numbers = #tpu.dot_dimension_numbers<[1], [0], [0], [1], [0, 0, 1, 1], [], []>} : vector<16x4xbf16>, vector<4x96xbf16>, vector<16x96xf32> -> vector<16x96xf32>
    %c0_4 = arith.constant 0 : index
    %c0_5 = arith.constant 0 : index
    %6 = vector.load %arg4[%c0_4, %c0_5] : memref<1x96xf32, #tpu.memory_space<vmem>>, vector<1x96xf32>
    %7 = vector.broadcast %6 : vector<1x96xf32> to vector<16x96xf32>
    %8 = arith.addf %5, %7 : vector<16x96xf32>
    %9 = vector.shape_cast %8 : vector<16x96xf32> to vector<2x8x96xf32>
    %c0_6 = arith.constant 0 : index
    %c0_7 = arith.constant 0 : index
    %10 = vector.load %arg3[%c0_6, %c0_7] : memref<32x96xf32, #tpu.memory_space<vmem>>, vector<32x96xf32>
    %11 = arith.truncf %10 : vector<32x96xf32> to vector<32x96xbf16>
    %c0_8 = arith.constant 0 : index
    %c0_9 = arith.constant 0 : index
    %12 = vector.load %arg5[%c0_8, %c0_9] : memref<1x32xf32, #tpu.memory_space<vmem>>, vector<1x32xf32>
    %13 = vector.shape_cast %12 : vector<1x32xf32> to vector<1x32xf32>
    %14 = vector.broadcast %13 : vector<1x32xf32> to vector<2x32xf32>
    %c0_10 = arith.constant 0 : index
    %c0_11 = arith.constant 0 : index
    %15 = vector.load %arg1[%c0_10, %c0_11] : memref<2x32xf32, #tpu.memory_space<vmem>>, vector<2x32xf32>
    %16 = vector.extract_strided_slice %9 {offsets = [0, 0, 0], sizes = [2, 1, 96], strides = [1, 1, 1]} : vector<2x8x96xf32> to vector<2x1x96xf32>
    %17 = vector.shape_cast %16 : vector<2x1x96xf32> to vector<2x96xf32>
    %18 = arith.truncf %15 : vector<2x32xf32> to vector<2x32xbf16>
    %cst_12 = arith.constant dense<0.000000e+00> : vector<2x96xf32>
    %19 = tpu.matmul %18, %11, %cst_12 {dimension_numbers = #tpu.dot_dimension_numbers<[1], [0], [0], [1], [0, 0, 1, 1], [], []>} : vector<2x32xbf16>, vector<32x96xbf16>, vector<2x96xf32> -> vector<2x96xf32>
    %20 = vector.extract_strided_slice %17 {offsets = [0, 0], sizes = [2, 64], strides = [1, 1]} : vector<2x96xf32> to vector<2x64xf32>
    %21 = vector.extract_strided_slice %19 {offsets = [0, 0], sizes = [2, 64], strides = [1, 1]} : vector<2x96xf32> to vector<2x64xf32>
    %22 = arith.addf %20, %21 : vector<2x64xf32>
    %23 = arith.negf %22 : vector<2x64xf32>
    %24 = math.exp %23 : vector<2x64xf32>
    %cst_13 = arith.constant 1.000000e+00 : f32
    %25 = vector.broadcast %cst_13 : f32 to vector<2x64xf32>
    %26 = arith.addf %25, %24 : vector<2x64xf32>
    %27 = arith.divf %25, %26 : vector<2x64xf32>
    %28 = vector.extract_strided_slice %27 {offsets = [0, 0], sizes = [2, 32], strides = [1, 1]} : vector<2x64xf32> to vector<2x32xf32>
    %29 = vector.extract_strided_slice %27 {offsets = [0, 32], sizes = [2, 32], strides = [1, 1]} : vector<2x64xf32> to vector<2x32xf32>
    %30 = vector.extract_strided_slice %17 {offsets = [0, 64], sizes = [2, 32], strides = [1, 1]} : vector<2x96xf32> to vector<2x32xf32>
    %31 = vector.extract_strided_slice %19 {offsets = [0, 64], sizes = [2, 32], strides = [1, 1]} : vector<2x96xf32> to vector<2x32xf32>
    %32 = arith.addf %31, %14 : vector<2x32xf32>
    %33 = arith.mulf %28, %32 : vector<2x32xf32>
    %34 = arith.addf %30, %33 : vector<2x32xf32>
    %35 = math.tanh %34 : vector<2x32xf32>
    %cst_14 = arith.constant 1.000000e+00 : f32
    %36 = vector.broadcast %cst_14 : f32 to vector<2x32xf32>
    %37 = arith.subf %36, %29 : vector<2x32xf32>
    %38 = arith.mulf %37, %35 : vector<2x32xf32>
    %39 = arith.mulf %29, %15 : vector<2x32xf32>
    %40 = arith.addf %38, %39 : vector<2x32xf32>
    %41 = vector.extract_strided_slice %9 {offsets = [0, 1, 0], sizes = [2, 1, 96], strides = [1, 1, 1]} : vector<2x8x96xf32> to vector<2x1x96xf32>
    %42 = vector.shape_cast %41 : vector<2x1x96xf32> to vector<2x96xf32>
    %43 = arith.truncf %40 : vector<2x32xf32> to vector<2x32xbf16>
    %cst_15 = arith.constant dense<0.000000e+00> : vector<2x96xf32>
    %44 = tpu.matmul %43, %11, %cst_15 {dimension_numbers = #tpu.dot_dimension_numbers<[1], [0], [0], [1], [0, 0, 1, 1], [], []>} : vector<2x32xbf16>, vector<32x96xbf16>, vector<2x96xf32> -> vector<2x96xf32>
    %45 = vector.extract_strided_slice %42 {offsets = [0, 0], sizes = [2, 64], strides = [1, 1]} : vector<2x96xf32> to vector<2x64xf32>
    %46 = vector.extract_strided_slice %44 {offsets = [0, 0], sizes = [2, 64], strides = [1, 1]} : vector<2x96xf32> to vector<2x64xf32>
    %47 = arith.addf %45, %46 : vector<2x64xf32>
    %48 = arith.negf %47 : vector<2x64xf32>
    %49 = math.exp %48 : vector<2x64xf32>
    %cst_16 = arith.constant 1.000000e+00 : f32
    %50 = vector.broadcast %cst_16 : f32 to vector<2x64xf32>
    %51 = arith.addf %50, %49 : vector<2x64xf32>
    %52 = arith.divf %50, %51 : vector<2x64xf32>
    %53 = vector.extract_strided_slice %52 {offsets = [0, 0], sizes = [2, 32], strides = [1, 1]} : vector<2x64xf32> to vector<2x32xf32>
    %54 = vector.extract_strided_slice %52 {offsets = [0, 32], sizes = [2, 32], strides = [1, 1]} : vector<2x64xf32> to vector<2x32xf32>
    %55 = vector.extract_strided_slice %42 {offsets = [0, 64], sizes = [2, 32], strides = [1, 1]} : vector<2x96xf32> to vector<2x32xf32>
    %56 = vector.extract_strided_slice %44 {offsets = [0, 64], sizes = [2, 32], strides = [1, 1]} : vector<2x96xf32> to vector<2x32xf32>
    %57 = arith.addf %56, %14 : vector<2x32xf32>
    %58 = arith.mulf %53, %57 : vector<2x32xf32>
    %59 = arith.addf %55, %58 : vector<2x32xf32>
    %60 = math.tanh %59 : vector<2x32xf32>
    %cst_17 = arith.constant 1.000000e+00 : f32
    %61 = vector.broadcast %cst_17 : f32 to vector<2x32xf32>
    %62 = arith.subf %61, %54 : vector<2x32xf32>
    %63 = arith.mulf %62, %60 : vector<2x32xf32>
    %64 = arith.mulf %54, %40 : vector<2x32xf32>
    %65 = arith.addf %63, %64 : vector<2x32xf32>
    %66 = vector.extract_strided_slice %9 {offsets = [0, 2, 0], sizes = [2, 1, 96], strides = [1, 1, 1]} : vector<2x8x96xf32> to vector<2x1x96xf32>
    %67 = vector.shape_cast %66 : vector<2x1x96xf32> to vector<2x96xf32>
    %68 = arith.truncf %65 : vector<2x32xf32> to vector<2x32xbf16>
    %cst_18 = arith.constant dense<0.000000e+00> : vector<2x96xf32>
    %69 = tpu.matmul %68, %11, %cst_18 {dimension_numbers = #tpu.dot_dimension_numbers<[1], [0], [0], [1], [0, 0, 1, 1], [], []>} : vector<2x32xbf16>, vector<32x96xbf16>, vector<2x96xf32> -> vector<2x96xf32>
    %70 = vector.extract_strided_slice %67 {offsets = [0, 0], sizes = [2, 64], strides = [1, 1]} : vector<2x96xf32> to vector<2x64xf32>
    %71 = vector.extract_strided_slice %69 {offsets = [0, 0], sizes = [2, 64], strides = [1, 1]} : vector<2x96xf32> to vector<2x64xf32>
    %72 = arith.addf %70, %71 : vector<2x64xf32>
    %73 = arith.negf %72 : vector<2x64xf32>
    %74 = math.exp %73 : vector<2x64xf32>
    %cst_19 = arith.constant 1.000000e+00 : f32
    %75 = vector.broadcast %cst_19 : f32 to vector<2x64xf32>
    %76 = arith.addf %75, %74 : vector<2x64xf32>
    %77 = arith.divf %75, %76 : vector<2x64xf32>
    %78 = vector.extract_strided_slice %77 {offsets = [0, 0], sizes = [2, 32], strides = [1, 1]} : vector<2x64xf32> to vector<2x32xf32>
    %79 = vector.extract_strided_slice %77 {offsets = [0, 32], sizes = [2, 32], strides = [1, 1]} : vector<2x64xf32> to vector<2x32xf32>
    %80 = vector.extract_strided_slice %67 {offsets = [0, 64], sizes = [2, 32], strides = [1, 1]} : vector<2x96xf32> to vector<2x32xf32>
    %81 = vector.extract_strided_slice %69 {offsets = [0, 64], sizes = [2, 32], strides = [1, 1]} : vector<2x96xf32> to vector<2x32xf32>
    %82 = arith.addf %81, %14 : vector<2x32xf32>
    %83 = arith.mulf %78, %82 : vector<2x32xf32>
    %84 = arith.addf %80, %83 : vector<2x32xf32>
    %85 = math.tanh %84 : vector<2x32xf32>
    %cst_20 = arith.constant 1.000000e+00 : f32
    %86 = vector.broadcast %cst_20 : f32 to vector<2x32xf32>
    %87 = arith.subf %86, %79 : vector<2x32xf32>
    %88 = arith.mulf %87, %85 : vector<2x32xf32>
    %89 = arith.mulf %79, %65 : vector<2x32xf32>
    %90 = arith.addf %88, %89 : vector<2x32xf32>
    %91 = vector.extract_strided_slice %9 {offsets = [0, 3, 0], sizes = [2, 1, 96], strides = [1, 1, 1]} : vector<2x8x96xf32> to vector<2x1x96xf32>
    %92 = vector.shape_cast %91 : vector<2x1x96xf32> to vector<2x96xf32>
    %93 = arith.truncf %90 : vector<2x32xf32> to vector<2x32xbf16>
    %cst_21 = arith.constant dense<0.000000e+00> : vector<2x96xf32>
    %94 = tpu.matmul %93, %11, %cst_21 {dimension_numbers = #tpu.dot_dimension_numbers<[1], [0], [0], [1], [0, 0, 1, 1], [], []>} : vector<2x32xbf16>, vector<32x96xbf16>, vector<2x96xf32> -> vector<2x96xf32>
    %95 = vector.extract_strided_slice %92 {offsets = [0, 0], sizes = [2, 64], strides = [1, 1]} : vector<2x96xf32> to vector<2x64xf32>
    %96 = vector.extract_strided_slice %94 {offsets = [0, 0], sizes = [2, 64], strides = [1, 1]} : vector<2x96xf32> to vector<2x64xf32>
    %97 = arith.addf %95, %96 : vector<2x64xf32>
    %98 = arith.negf %97 : vector<2x64xf32>
    %99 = math.exp %98 : vector<2x64xf32>
    %cst_22 = arith.constant 1.000000e+00 : f32
    %100 = vector.broadcast %cst_22 : f32 to vector<2x64xf32>
    %101 = arith.addf %100, %99 : vector<2x64xf32>
    %102 = arith.divf %100, %101 : vector<2x64xf32>
    %103 = vector.extract_strided_slice %102 {offsets = [0, 0], sizes = [2, 32], strides = [1, 1]} : vector<2x64xf32> to vector<2x32xf32>
    %104 = vector.extract_strided_slice %102 {offsets = [0, 32], sizes = [2, 32], strides = [1, 1]} : vector<2x64xf32> to vector<2x32xf32>
    %105 = vector.extract_strided_slice %92 {offsets = [0, 64], sizes = [2, 32], strides = [1, 1]} : vector<2x96xf32> to vector<2x32xf32>
    %106 = vector.extract_strided_slice %94 {offsets = [0, 64], sizes = [2, 32], strides = [1, 1]} : vector<2x96xf32> to vector<2x32xf32>
    %107 = arith.addf %106, %14 : vector<2x32xf32>
    %108 = arith.mulf %103, %107 : vector<2x32xf32>
    %109 = arith.addf %105, %108 : vector<2x32xf32>
    %110 = math.tanh %109 : vector<2x32xf32>
    %cst_23 = arith.constant 1.000000e+00 : f32
    %111 = vector.broadcast %cst_23 : f32 to vector<2x32xf32>
    %112 = arith.subf %111, %104 : vector<2x32xf32>
    %113 = arith.mulf %112, %110 : vector<2x32xf32>
    %114 = arith.mulf %104, %90 : vector<2x32xf32>
    %115 = arith.addf %113, %114 : vector<2x32xf32>
    %116 = vector.extract_strided_slice %9 {offsets = [0, 4, 0], sizes = [2, 1, 96], strides = [1, 1, 1]} : vector<2x8x96xf32> to vector<2x1x96xf32>
    %117 = vector.shape_cast %116 : vector<2x1x96xf32> to vector<2x96xf32>
    %118 = arith.truncf %115 : vector<2x32xf32> to vector<2x32xbf16>
    %cst_24 = arith.constant dense<0.000000e+00> : vector<2x96xf32>
    %119 = tpu.matmul %118, %11, %cst_24 {dimension_numbers = #tpu.dot_dimension_numbers<[1], [0], [0], [1], [0, 0, 1, 1], [], []>} : vector<2x32xbf16>, vector<32x96xbf16>, vector<2x96xf32> -> vector<2x96xf32>
    %120 = vector.extract_strided_slice %117 {offsets = [0, 0], sizes = [2, 64], strides = [1, 1]} : vector<2x96xf32> to vector<2x64xf32>
    %121 = vector.extract_strided_slice %119 {offsets = [0, 0], sizes = [2, 64], strides = [1, 1]} : vector<2x96xf32> to vector<2x64xf32>
    %122 = arith.addf %120, %121 : vector<2x64xf32>
    %123 = arith.negf %122 : vector<2x64xf32>
    %124 = math.exp %123 : vector<2x64xf32>
    %cst_25 = arith.constant 1.000000e+00 : f32
    %125 = vector.broadcast %cst_25 : f32 to vector<2x64xf32>
    %126 = arith.addf %125, %124 : vector<2x64xf32>
    %127 = arith.divf %125, %126 : vector<2x64xf32>
    %128 = vector.extract_strided_slice %127 {offsets = [0, 0], sizes = [2, 32], strides = [1, 1]} : vector<2x64xf32> to vector<2x32xf32>
    %129 = vector.extract_strided_slice %127 {offsets = [0, 32], sizes = [2, 32], strides = [1, 1]} : vector<2x64xf32> to vector<2x32xf32>
    %130 = vector.extract_strided_slice %117 {offsets = [0, 64], sizes = [2, 32], strides = [1, 1]} : vector<2x96xf32> to vector<2x32xf32>
    %131 = vector.extract_strided_slice %119 {offsets = [0, 64], sizes = [2, 32], strides = [1, 1]} : vector<2x96xf32> to vector<2x32xf32>
    %132 = arith.addf %131, %14 : vector<2x32xf32>
    %133 = arith.mulf %128, %132 : vector<2x32xf32>
    %134 = arith.addf %130, %133 : vector<2x32xf32>
    %135 = math.tanh %134 : vector<2x32xf32>
    %cst_26 = arith.constant 1.000000e+00 : f32
    %136 = vector.broadcast %cst_26 : f32 to vector<2x32xf32>
    %137 = arith.subf %136, %129 : vector<2x32xf32>
    %138 = arith.mulf %137, %135 : vector<2x32xf32>
    %139 = arith.mulf %129, %115 : vector<2x32xf32>
    %140 = arith.addf %138, %139 : vector<2x32xf32>
    %141 = vector.extract_strided_slice %9 {offsets = [0, 5, 0], sizes = [2, 1, 96], strides = [1, 1, 1]} : vector<2x8x96xf32> to vector<2x1x96xf32>
    %142 = vector.shape_cast %141 : vector<2x1x96xf32> to vector<2x96xf32>
    %143 = arith.truncf %140 : vector<2x32xf32> to vector<2x32xbf16>
    %cst_27 = arith.constant dense<0.000000e+00> : vector<2x96xf32>
    %144 = tpu.matmul %143, %11, %cst_27 {dimension_numbers = #tpu.dot_dimension_numbers<[1], [0], [0], [1], [0, 0, 1, 1], [], []>} : vector<2x32xbf16>, vector<32x96xbf16>, vector<2x96xf32> -> vector<2x96xf32>
    %145 = vector.extract_strided_slice %142 {offsets = [0, 0], sizes = [2, 64], strides = [1, 1]} : vector<2x96xf32> to vector<2x64xf32>
    %146 = vector.extract_strided_slice %144 {offsets = [0, 0], sizes = [2, 64], strides = [1, 1]} : vector<2x96xf32> to vector<2x64xf32>
    %147 = arith.addf %145, %146 : vector<2x64xf32>
    %148 = arith.negf %147 : vector<2x64xf32>
    %149 = math.exp %148 : vector<2x64xf32>
    %cst_28 = arith.constant 1.000000e+00 : f32
    %150 = vector.broadcast %cst_28 : f32 to vector<2x64xf32>
    %151 = arith.addf %150, %149 : vector<2x64xf32>
    %152 = arith.divf %150, %151 : vector<2x64xf32>
    %153 = vector.extract_strided_slice %152 {offsets = [0, 0], sizes = [2, 32], strides = [1, 1]} : vector<2x64xf32> to vector<2x32xf32>
    %154 = vector.extract_strided_slice %152 {offsets = [0, 32], sizes = [2, 32], strides = [1, 1]} : vector<2x64xf32> to vector<2x32xf32>
    %155 = vector.extract_strided_slice %142 {offsets = [0, 64], sizes = [2, 32], strides = [1, 1]} : vector<2x96xf32> to vector<2x32xf32>
    %156 = vector.extract_strided_slice %144 {offsets = [0, 64], sizes = [2, 32], strides = [1, 1]} : vector<2x96xf32> to vector<2x32xf32>
    %157 = arith.addf %156, %14 : vector<2x32xf32>
    %158 = arith.mulf %153, %157 : vector<2x32xf32>
    %159 = arith.addf %155, %158 : vector<2x32xf32>
    %160 = math.tanh %159 : vector<2x32xf32>
    %cst_29 = arith.constant 1.000000e+00 : f32
    %161 = vector.broadcast %cst_29 : f32 to vector<2x32xf32>
    %162 = arith.subf %161, %154 : vector<2x32xf32>
    %163 = arith.mulf %162, %160 : vector<2x32xf32>
    %164 = arith.mulf %154, %140 : vector<2x32xf32>
    %165 = arith.addf %163, %164 : vector<2x32xf32>
    %166 = vector.extract_strided_slice %9 {offsets = [0, 6, 0], sizes = [2, 1, 96], strides = [1, 1, 1]} : vector<2x8x96xf32> to vector<2x1x96xf32>
    %167 = vector.shape_cast %166 : vector<2x1x96xf32> to vector<2x96xf32>
    %168 = arith.truncf %165 : vector<2x32xf32> to vector<2x32xbf16>
    %cst_30 = arith.constant dense<0.000000e+00> : vector<2x96xf32>
    %169 = tpu.matmul %168, %11, %cst_30 {dimension_numbers = #tpu.dot_dimension_numbers<[1], [0], [0], [1], [0, 0, 1, 1], [], []>} : vector<2x32xbf16>, vector<32x96xbf16>, vector<2x96xf32> -> vector<2x96xf32>
    %170 = vector.extract_strided_slice %167 {offsets = [0, 0], sizes = [2, 64], strides = [1, 1]} : vector<2x96xf32> to vector<2x64xf32>
    %171 = vector.extract_strided_slice %169 {offsets = [0, 0], sizes = [2, 64], strides = [1, 1]} : vector<2x96xf32> to vector<2x64xf32>
    %172 = arith.addf %170, %171 : vector<2x64xf32>
    %173 = arith.negf %172 : vector<2x64xf32>
    %174 = math.exp %173 : vector<2x64xf32>
    %cst_31 = arith.constant 1.000000e+00 : f32
    %175 = vector.broadcast %cst_31 : f32 to vector<2x64xf32>
    %176 = arith.addf %175, %174 : vector<2x64xf32>
    %177 = arith.divf %175, %176 : vector<2x64xf32>
    %178 = vector.extract_strided_slice %177 {offsets = [0, 0], sizes = [2, 32], strides = [1, 1]} : vector<2x64xf32> to vector<2x32xf32>
    %179 = vector.extract_strided_slice %177 {offsets = [0, 32], sizes = [2, 32], strides = [1, 1]} : vector<2x64xf32> to vector<2x32xf32>
    %180 = vector.extract_strided_slice %167 {offsets = [0, 64], sizes = [2, 32], strides = [1, 1]} : vector<2x96xf32> to vector<2x32xf32>
    %181 = vector.extract_strided_slice %169 {offsets = [0, 64], sizes = [2, 32], strides = [1, 1]} : vector<2x96xf32> to vector<2x32xf32>
    %182 = arith.addf %181, %14 : vector<2x32xf32>
    %183 = arith.mulf %178, %182 : vector<2x32xf32>
    %184 = arith.addf %180, %183 : vector<2x32xf32>
    %185 = math.tanh %184 : vector<2x32xf32>
    %cst_32 = arith.constant 1.000000e+00 : f32
    %186 = vector.broadcast %cst_32 : f32 to vector<2x32xf32>
    %187 = arith.subf %186, %179 : vector<2x32xf32>
    %188 = arith.mulf %187, %185 : vector<2x32xf32>
    %189 = arith.mulf %179, %165 : vector<2x32xf32>
    %190 = arith.addf %188, %189 : vector<2x32xf32>
    %191 = vector.extract_strided_slice %9 {offsets = [0, 7, 0], sizes = [2, 1, 96], strides = [1, 1, 1]} : vector<2x8x96xf32> to vector<2x1x96xf32>
    %192 = vector.shape_cast %191 : vector<2x1x96xf32> to vector<2x96xf32>
    %193 = arith.truncf %190 : vector<2x32xf32> to vector<2x32xbf16>
    %cst_33 = arith.constant dense<0.000000e+00> : vector<2x96xf32>
    %194 = tpu.matmul %193, %11, %cst_33 {dimension_numbers = #tpu.dot_dimension_numbers<[1], [0], [0], [1], [0, 0, 1, 1], [], []>} : vector<2x32xbf16>, vector<32x96xbf16>, vector<2x96xf32> -> vector<2x96xf32>
    %195 = vector.extract_strided_slice %192 {offsets = [0, 0], sizes = [2, 64], strides = [1, 1]} : vector<2x96xf32> to vector<2x64xf32>
    %196 = vector.extract_strided_slice %194 {offsets = [0, 0], sizes = [2, 64], strides = [1, 1]} : vector<2x96xf32> to vector<2x64xf32>
    %197 = arith.addf %195, %196 : vector<2x64xf32>
    %198 = arith.negf %197 : vector<2x64xf32>
    %199 = math.exp %198 : vector<2x64xf32>
    %cst_34 = arith.constant 1.000000e+00 : f32
    %200 = vector.broadcast %cst_34 : f32 to vector<2x64xf32>
    %201 = arith.addf %200, %199 : vector<2x64xf32>
    %202 = arith.divf %200, %201 : vector<2x64xf32>
    %203 = vector.extract_strided_slice %202 {offsets = [0, 0], sizes = [2, 32], strides = [1, 1]} : vector<2x64xf32> to vector<2x32xf32>
    %204 = vector.extract_strided_slice %202 {offsets = [0, 32], sizes = [2, 32], strides = [1, 1]} : vector<2x64xf32> to vector<2x32xf32>
    %205 = vector.extract_strided_slice %192 {offsets = [0, 64], sizes = [2, 32], strides = [1, 1]} : vector<2x96xf32> to vector<2x32xf32>
    %206 = vector.extract_strided_slice %194 {offsets = [0, 64], sizes = [2, 32], strides = [1, 1]} : vector<2x96xf32> to vector<2x32xf32>
    %207 = arith.addf %206, %14 : vector<2x32xf32>
    %208 = arith.mulf %203, %207 : vector<2x32xf32>
    %209 = arith.addf %205, %208 : vector<2x32xf32>
    %210 = math.tanh %209 : vector<2x32xf32>
    %cst_35 = arith.constant 1.000000e+00 : f32
    %211 = vector.broadcast %cst_35 : f32 to vector<2x32xf32>
    %212 = arith.subf %211, %204 : vector<2x32xf32>
    %213 = arith.mulf %212, %210 : vector<2x32xf32>
    %214 = arith.mulf %204, %190 : vector<2x32xf32>
    %215 = arith.addf %213, %214 : vector<2x32xf32>
    %c0_36 = arith.constant 0 : index
    %c0_37 = arith.constant 0 : index
    %216 = vector.load %arg9[%c0_36, %c0_37] : memref<2x32xf32, #tpu.memory_space<vmem>>, vector<2x32xf32>
    tpu.vector_store %arg9[%c0_36, %c0_37], %215 {strides = array<i32>} : memref<2x32xf32, #tpu.memory_space<vmem>>, vector<2x32xf32>,
    %217 = vector.shape_cast %40 : vector<2x32xf32> to vector<1x2x32xf32>
    %218 = vector.shape_cast %65 : vector<2x32xf32> to vector<1x2x32xf32>
    %219 = vector.shape_cast %90 : vector<2x32xf32> to vector<1x2x32xf32>
    %220 = vector.shape_cast %115 : vector<2x32xf32> to vector<1x2x32xf32>
    %221 = vector.shape_cast %140 : vector<2x32xf32> to vector<1x2x32xf32>
    %222 = vector.shape_cast %165 : vector<2x32xf32> to vector<1x2x32xf32>
    %223 = vector.shape_cast %190 : vector<2x32xf32> to vector<1x2x32xf32>
    %224 = vector.shape_cast %215 : vector<2x32xf32> to vector<1x2x32xf32>
    %225 = tpu.concatenate %217, %218, %219, %220, %221, %222, %223, %224 in 0 : vector<1x2x32xf32>, vector<1x2x32xf32>, vector<1x2x32xf32>, vector<1x2x32xf32>, vector<1x2x32xf32>, vector<1x2x32xf32>, vector<1x2x32xf32>, vector<1x2x32xf32> -> vector<8x2x32xf32>
    %226 = vector.shape_cast %225 : vector<8x2x32xf32> to vector<16x32xf32>
    %227 = arith.truncf %226 : vector<16x32xf32> to vector<16x32xbf16>
    %c0_38 = arith.constant 0 : index
    %c0_39 = arith.constant 0 : index
    %228 = vector.load %arg6[%c0_38, %c0_39] : memref<32x4xf32, #tpu.memory_space<vmem>>, vector<32x4xf32>
    %229 = arith.truncf %228 : vector<32x4xf32> to vector<32x4xbf16>
    %cst_40 = arith.constant dense<0.000000e+00> : vector<16x4xf32>
    %230 = tpu.matmul %227, %229, %cst_40 {dimension_numbers = #tpu.dot_dimension_numbers<[1], [0], [0], [1], [0, 0, 1, 1], [], []>} : vector<16x32xbf16>, vector<32x4xbf16>, vector<16x4xf32> -> vector<16x4xf32>
    %c0_41 = arith.constant 0 : index
    %c0_42 = arith.constant 0 : index
    %231 = vector.load %arg7[%c0_41, %c0_42] : memref<1x4xf32, #tpu.memory_space<vmem>>, vector<1x4xf32>
    %232 = vector.broadcast %231 : vector<1x4xf32> to vector<16x4xf32>
    %233 = arith.addf %230, %232 : vector<16x4xf32>
    %234 = vector.shape_cast %233 : vector<16x4xf32> to vector<8x2x4xf32>
    %235 = tpu.transpose %234, [1, 0, 2] : vector<8x2x4xf32> -> vector<2x8x4xf32>
    %c0_43 = arith.constant 0 : index
    %c0_44 = arith.constant 0 : index
    %c0_45 = arith.constant 0 : index
    %236 = vector.load %arg8[%c0_43, %c0_44, %c0_45] : memref<2x8x4xf32, #tpu.memory_space<vmem>>, vector<2x8x4xf32>
    tpu.vector_store %arg8[%c0_43, %c0_44, %c0_45], %235 {strides = array<i32>} : memref<2x8x4xf32, #tpu.memory_space<vmem>>, vector<2x8x4xf32>,
    return
  }
}

</mosaic_0001>

<llo_original>
// kernel: tpu_custom_call.1
$region0: #{tpu_custom_call.1}
  #allocation0 [shape = 'u32[]', space=smem, size = 0x4, offset = 0x4, fixed_abs, tag = 'smem constant byte address 0x4 - core index']
  #allocation1 [shape = 'u32[72,128]{1,0:T(1,128)}', space=vmem, size = 0x9000, scoped, tag = 'internal scratch']
  %s0 = inlined_call_operand.vmem [shape: f32[2,8,4], index: 0, kind: input, shape index: {}]
  %s1 = inlined_call_operand.vmem [shape: f32[2,32], index: 1, kind: input, shape index: {}]
  %s2 = inlined_call_operand.vmem [shape: f32[4,96], index: 2, kind: input, shape index: {}]
  %s3 = inlined_call_operand.vmem [shape: f32[32,96], index: 3, kind: input, shape index: {}]
  %s4 = inlined_call_operand.vmem [shape: f32[1,96], index: 4, kind: input, shape index: {}]
  %s5 = inlined_call_operand.vmem [shape: f32[1,32], index: 5, kind: input, shape index: {}]
  %s6 = inlined_call_operand.vmem [shape: f32[32,4], index: 6, kind: input, shape index: {}]
  %s7 = inlined_call_operand.vmem [shape: f32[1,4], index: 7, kind: input, shape index: {}]
  %s8 = inlined_call_operand.vmem [shape: f32[2,8,4], index: 8, kind: output, shape index: {0}]
  %s9 = inlined_call_operand.hbm [shape: f32[2,32], index: 9, kind: output, shape index: {1}]
  %10 = xla_tuple %s8, %s9
  %s11 = sld [smem:[#allocation0]]
  $region50: #{tpu_custom_call.1} parent=0
    _
  %s13 = ssub.s32 1, %s11
  %s14 = scalar_select 0, %s13, %s11
  $region1: #{tpu_custom_call.1} parent=0
    #allocation2 [shape = 'u8[1024]{0}', space=vmem, size = 0x400, scoped, tag = 'output window, operand 1, single buffered']
    #allocation3 [shape = 's32[1]{0}', space=sflag, size = 0x4, scoped, tag = 'scoped memory for tpu_custom_call.1']
    %15 = vsyncpa [#allocation3], 0
    // Predicated region
    $region2: #{tpu_custom_call.1} parent=1 // pred_check
      _
    $region3: #{tpu_custom_call.1} parent=1 // pred_check_branch
      %17 = sbr.rel (0) target = $region5
    $region4: #{tpu_custom_call.1} parent=1 // pred_region
      _
    $region5: #{tpu_custom_call.1} parent=1 // pred_fallthru
      _
    // Predicated region
    $region6: #{tpu_custom_call.1} parent=1 // pred_check
      _
    $region7: #{tpu_custom_call.1} parent=1 // pred_check_branch
      %19 = sbr.rel (0) target = $region9
    $region8: #{tpu_custom_call.1} parent=1 // pred_region
      _
    $region9: #{tpu_custom_call.1} parent=1 // pred_fallthru
      _
    // Predicated region
    $region10: #{tpu_custom_call.1} parent=1 // pred_check
      _
    $region11: #{tpu_custom_call.1} parent=1 // pred_check_branch
      %21 = sbr.rel (0) target = $region13
    $region12: #{tpu_custom_call.1} parent=1 // pred_region
      _
    $region13: #{tpu_custom_call.1} parent=1 // pred_fallthru
      _
    // Predicated region
    $region14: #{tpu_custom_call.1} parent=1 // pred_check
      _
    $region15: #{tpu_custom_call.1} parent=1 // pred_check_branch
      %23 = sbr.rel (0) target = $region17
    $region16: #{tpu_custom_call.1} parent=1 // pred_region
      _
    $region17: #{tpu_custom_call.1} parent=1 // pred_fallthru
      _
    // Predicated region
    $region18: #{tpu_custom_call.1} parent=1 // pred_check
      _
    $region19: #{tpu_custom_call.1} parent=1 // pred_check_branch
      %25 = sbr.rel (0) target = $region21
    $region20: #{tpu_custom_call.1} parent=1 // pred_region
      _
    $region21: #{tpu_custom_call.1} parent=1 // pred_fallthru
      _
    // Predicated region
    $region22: #{tpu_custom_call.1} parent=1 // pred_check
      _
    $region23: #{tpu_custom_call.1} parent=1 // pred_check_branch
      %27 = sbr.rel (0) target = $region25
    $region24: #{tpu_custom_call.1} parent=1 // pred_region
      _
    $region25: #{tpu_custom_call.1} parent=1 // pred_fallthru
      _
    // Predicated region
    $region26: #{tpu_custom_call.1} parent=1 // pred_check
      _
    $region27: #{tpu_custom_call.1} parent=1 // pred_check_branch
      %29 = sbr.rel (0) target = $region29
    $region28: #{tpu_custom_call.1} parent=1 // pred_region
      _
    $region29: #{tpu_custom_call.1} parent=1 // pred_fallthru
      _
    // Predicated region
    $region30: #{tpu_custom_call.1} parent=1 // pred_check
      _
    $region31: #{tpu_custom_call.1} parent=1 // pred_check_branch
      %31 = sbr.rel (0) target = $region33
    $region32: #{tpu_custom_call.1} parent=1 // pred_region
      _
    $region33: #{tpu_custom_call.1} parent=1 // pred_fallthru
      _
    %v33 = vld [vmem:[%s0] sm:$0xff]
    %v34 = vld [vmem:[%s0 + $0x8] sm:$0xff]
    %v35 = vpack.c.bf16 %v34, %v33
    %v36 = vld [vmem:[%s2] sm:$0xf]
    %v37 = vpack.c.bf16 %v36, %v36
    %v38 = vld [vmem:[%s4] sm:$0x1]
    %v40 = vperm.slane %v38, 0
    %vm42 = vcmask 31744
    %v44 = vsel %vm42, %v35, 0
    %vm46 = vcmask 1041408
    %v48 = vsel %vm46, %v37, 0
    %50 = vmatpush.bf16.msra.mxu0 0
    %51 = vmatpush.bf16.msra.mxu0 0
    %52 = vmatpush.bf16.msra.mxu0 0
    %53 = vmatpush.bf16.msra.mxu0 0
    %54 = vmatpush.bf16.msra.mxu0 0
    %55 = vmatpush.bf16.msra.mxu0 0
    %56 = vmatpush.bf16.msra.mxu0 0
    %57 = vmatpush.bf16.msra.mxu0 %v48
    %58 = vmatmul.bf16.gmra.mxu0 %v44
    %v59 = vpop.f32.mrf.mxu0
    %v60 = vadd.f32 %v40, %v59
    %v61 = vpop.f32.mrf.mxu0
    %v62 = vadd.f32 %v40, %v61
    %63 = vdwg.mxu0
    %v64 = vld [vmem:[%s3] sm:$0xff]
    %v65 = vld [vmem:[%s3 + $0x8] sm:$0xff]
    %v66 = vld [vmem:[%s3 + $0x10] sm:$0xff]
    %v67 = vld [vmem:[%s3 + $0x18] sm:$0xff]
    %v68 = vpack.c.bf16 %v65, %v64
    %v69 = vpack.c.bf16 %v67, %v66
    %v70 = vld [vmem:[%s5] sm:$0x1]
    %v72 = vperm.slane %v70, 0
    %v73 = vld [vmem:[%s1] sm:$0x3]
    %v74 = vpack.c.bf16 %v73, %v73
    %vm75 = vcmask 261120
    %v77 = vsel %vm75, %v74, 0
    %79 = vmatpush.bf16.msra.mxu0 0
    %80 = vmatpush.bf16.msra.mxu0 0
    %81 = vmatpush.bf16.msra.mxu0 0
    %82 = vmatpush.bf16.msra.mxu0 0
    %83 = vmatpush.bf16.msra.mxu0 0
    %84 = vmatpush.bf16.msra.mxu0 0
    %85 = vmatpush.bf16.msra.mxu0 %v69
    %86 = vmatpush.bf16.msra.mxu0 %v68
    %87 = vmatmul.bf16.gmra.mxu0 %v77
    %v88 = vpop.f32.mrf.mxu0
    %v89 = vadd.f32 0.0, %v88
    %v90 = vpop.f32.mrf.mxu0
    %91 = vdwg.mxu0
    %v93 = vrot.slane %v89, 1
    %v96 = vadd.f32 %v60, %v89
    %v97 = vadd.f32 %v62, %v93
    %v98 = vxor.u32 %v96, 2147483648
    %v99 = vxor.u32 %v97, 2147483648
    %v100 = vmul.f32 %v98, 1.442695
    %v101 = vpow.pop %v100
    %v102 = vmul.f32 %v99, 1.442695
    %v103 = vpow.pop %v102
    %v104 = vadd.f32 %v101, 1.0
    %v105 = vadd.f32 %v103, 1.0
    %v106 = vrcp.pop %v104
    %v107 = vmul.f32 %v104, %v106
    %v108 = vsub.f32 1.0, %v107
    %v109 = vmul.f32 %v106, %v108
    %v110 = vadd.f32 %v106, %v109
    %vm111 = vweird.f32 %v104
    %vm112 = vweird.f32 %v106
    %vm113 = vmor %vm111, %vm112
    %v114 = vsel %vm113, %v106, %v110
    %v115 = vand.u32 2147483647, %v104
    %vm116 = vcmp.eq.f32.partialorder %v115, 8.507059e+37
    %v117 = vand.u32 %v104, 2147483648
    %v118 = vor.u32 1.1754944e-38, %v117
    %v119 = vsel %vm116, %v118, %v114
    %v120 = vmul.f32 1.0, %v119
    %v121 = vrcp.pop %v105
    %v122 = vmul.f32 %v105, %v121
    %v123 = vsub.f32 1.0, %v122
    %v124 = vmul.f32 %v121, %v123
    %v125 = vadd.f32 %v121, %v124
    %vm126 = vweird.f32 %v105
    %vm127 = vweird.f32 %v121
    %vm128 = vmor %vm126, %vm127
    %v129 = vsel %vm128, %v121, %v125
    %v130 = vand.u32 2147483647, %v105
    %vm131 = vcmp.eq.f32.partialorder %v130, 8.507059e+37
    %v132 = vand.u32 %v105, 2147483648
    %v133 = vor.u32 1.1754944e-38, %v132
    %v134 = vsel %vm131, %v133, %v129
    %v135 = vmul.f32 1.0, %v134
    %136 = vrot.lane.b32.xlu0 %v72, 64
    %v137 = vpop.permute.xlu0 %136
    %v139 = vadd.f32 %v89, %v137
    %v141 = vrot.slane %v139, 1
    %142 = vrot.lane.b32.xlu0 %v139, 64
    %v143 = vpop.permute.xlu0 %142
    %144 = vrot.lane.b32.xlu0 %v141, 64
    %v145 = vpop.permute.xlu0 %144
    %v148 = vmul.f32 %v120, %v143
    %v149 = vmul.f32 %v135, %v145
    %152 = vrot.lane.b32.xlu0 %v148, 64
    %v153 = vpop.permute.xlu0 %152
    %154 = vrot.lane.b32.xlu0 %v149, 64
    %v155 = vpop.permute.xlu0 %154
    %v158 = vadd.f32 %v60, %v153
    %v159 = vadd.f32 %v62, %v155
    %v160 = vtanh.pop %v158
    %v161 = vtanh.pop %v159
    %v162 = vsub.f32 1.0, %v120
    %v163 = vsub.f32 1.0, %v135
    %166 = vrot.lane.b32.xlu0 %v160, 96
    %v167 = vpop.permute.xlu0 %166
    %168 = vrot.lane.b32.xlu0 %v161, 96
    %v169 = vpop.permute.xlu0 %168
    %v172 = vmul.f32 %v162, %v167
    %v173 = vmul.f32 %v163, %v169
    %v175 = vrot.slane %v73, 1
    %176 = vrot.lane.b32.xlu0 %v73, 32
    %v177 = vpop.permute.xlu0 %176
    %178 = vrot.lane.b32.xlu0 %v175, 32
    %v179 = vpop.permute.xlu0 %178
    %v182 = vmul.f32 %v120, %v177
    %v183 = vmul.f32 %v135, %v179
    %v184 = vadd.f32 %v172, %v182
    %v185 = vadd.f32 %v173, %v183
    %v186 = vpack.c.bf16 %v184, %v184
    %v187 = vpack.c.bf16 %v185, %v185
    %v190 = vunpack.c.l.b16 %v186
    %v191 = vunpack.c.l.b16 %v187
    %v192 = vrot.slane %v191, 7
    %vm193 = vcmask 1041409
    %v194 = vsel %vm193, %v192, %v190
    %v195 = vpack.c.b16 %v194, %v194
    %196 = vrot.lane.b32.xlu0 %v195, 96
    %v197 = vpop.permute.xlu0 %196
    %v199 = vsel %vm75, %v197, 0
    %201 = vmatpush.bf16.msra.mxu0 0
    %202 = vmatpush.bf16.msra.mxu0 0
    %203 = vmatpush.bf16.msra.mxu0 0
    %204 = vmatpush.bf16.msra.mxu0 0
    %205 = vmatpush.bf16.msra.mxu0 0
    %206 = vmatpush.bf16.msra.mxu0 0
    %207 = vmatpush.bf16.msra.mxu0 %v69
    %208 = vmatpush.bf16.msra.mxu0 %v68
    %209 = vmatmul.bf16.gmra.mxu0 %v199
    %v210 = vpop.f32.mrf.mxu0
    %v211 = vadd.f32 0.0, %v210
    %v212 = vpop.f32.mrf.mxu0
    %213 = vdwg.mxu0
    %v215 = vrot.slane %v211, 7
    %v218 = vadd.f32 %v60, %v215
    %v219 = vadd.f32 %v62, %v211
    %v220 = vxor.u32 %v218, 2147483648
    %v221 = vxor.u32 %v219, 2147483648
    %v222 = vmul.f32 %v220, 1.442695
    %v223 = vpow.pop %v222
    %v224 = vmul.f32 %v221, 1.442695
    %v225 = vpow.pop %v224
    %v226 = vadd.f32 %v223, 1.0
    %v227 = vadd.f32 %v225, 1.0
    %v228 = vrcp.pop %v226
    %v229 = vmul.f32 %v226, %v228
    %v230 = vsub.f32 1.0, %v229
    %v231 = vmul.f32 %v228, %v230
    %v232 = vadd.f32 %v228, %v231
    %vm233 = vweird.f32 %v226
    %vm234 = vweird.f32 %v228
    %vm235 = vmor %vm233, %vm234
    %v236 = vsel %vm235, %v228, %v232
    %v237 = vand.u32 2147483647, %v226
    %vm238 = vcmp.eq.f32.partialorder %v237, 8.507059e+37
    %v239 = vand.u32 %v226, 2147483648
    %v240 = vor.u32 1.1754944e-38, %v239
    %v241 = vsel %vm238, %v240, %v236
    %v242 = vmul.f32 1.0, %v241
    %v243 = vrcp.pop %v227
    %v244 = vmul.f32 %v227, %v243
    %v245 = vsub.f32 1.0, %v244
    %v246 = vmul.f32 %v243, %v245
    %v247 = vadd.f32 %v243, %v246
    %vm248 = vweird.f32 %v227
    %vm249 = vweird.f32 %v243
    %vm250 = vmor %vm248, %vm249
    %v251 = vsel %vm250, %v243, %v247
    %v252 = vand.u32 2147483647, %v227
    %vm253 = vcmp.eq.f32.partialorder %v252, 8.507059e+37
    %v254 = vand.u32 %v227, 2147483648
    %v255 = vor.u32 1.1754944e-38, %v254
    %v256 = vsel %vm253, %v255, %v251
    %v257 = vmul.f32 1.0, %v256
    %v258 = vadd.f32 %v211, %v137
    %v260 = vrot.slane %v258, 7
    %261 = vrot.lane.b32.xlu0 %v260, 64
    %v262 = vpop.permute.xlu0 %261
    %263 = vrot.lane.b32.xlu0 %v258, 64
    %v264 = vpop.permute.xlu0 %263
    %v267 = vmul.f32 %v242, %v262
    %v268 = vmul.f32 %v257, %v264
    %271 = vrot.lane.b32.xlu0 %v267, 64
    %v272 = vpop.permute.xlu0 %271
    %273 = vrot.lane.b32.xlu0 %v268, 64
    %v274 = vpop.permute.xlu0 %273
    %v277 = vadd.f32 %v60, %v272
    %v278 = vadd.f32 %v62, %v274
    %v279 = vtanh.pop %v277
    %v280 = vtanh.pop %v278
    %v281 = vsub.f32 1.0, %v242
    %v282 = vsub.f32 1.0, %v257
    %285 = vrot.lane.b32.xlu0 %v279, 96
    %v286 = vpop.permute.xlu0 %285
    %287 = vrot.lane.b32.xlu0 %v280, 96
    %v288 = vpop.permute.xlu0 %287
    %v291 = vmul.f32 %v281, %v286
    %v292 = vmul.f32 %v282, %v288
    %v295 = vrot.slane %v184, 7
    %v296 = vrot.slane %v185, 7
    %v299 = vmul.f32 %v242, %v295
    %v300 = vmul.f32 %v257, %v296
    %v301 = vadd.f32 %v291, %v299
    %v302 = vadd.f32 %v292, %v300
    %v303 = vpack.c.bf16 %v301, %v301
    %v304 = vpack.c.bf16 %v302, %v302
    %v307 = vunpack.c.l.b16 %v303
    %v308 = vunpack.c.l.b16 %v304
    %v309 = vrot.slane %v307, 1
    %v310 = vsel %vm193, %v308, %v309
    %v311 = vpack.c.b16 %v310, %v310
    %312 = vrot.lane.b32.xlu0 %v311, 96
    %v313 = vpop.permute.xlu0 %312
    %v315 = vsel %vm75, %v313, 0
    %317 = vmatpush.bf16.msra.mxu0 0
    %318 = vmatpush.bf16.msra.mxu0 0
    %319 = vmatpush.bf16.msra.mxu0 0
    %320 = vmatpush.bf16.msra.mxu0 0
    %321 = vmatpush.bf16.msra.mxu0 0
    %322 = vmatpush.bf16.msra.mxu0 0
    %323 = vmatpush.bf16.msra.mxu0 %v69
    %324 = vmatpush.bf16.msra.mxu0 %v68
    %325 = vmatmul.bf16.gmra.mxu0 %v315
    %v326 = vpop.f32.mrf.mxu0
    %v327 = vadd.f32 0.0, %v326
    %v328 = vpop.f32.mrf.mxu0
    %329 = vdwg.mxu0
    %v331 = vrot.slane %v327, 6
    %v332 = vrot.slane %v327, 7
    %v335 = vadd.f32 %v60, %v331
    %v336 = vadd.f32 %v62, %v332
    %v337 = vxor.u32 %v335, 2147483648
    %v338 = vxor.u32 %v336, 2147483648
    %v339 = vmul.f32 %v337, 1.442695
    %v340 = vpow.pop %v339
    %v341 = vmul.f32 %v338, 1.442695
    %v342 = vpow.pop %v341
    %v343 = vadd.f32 %v340, 1.0
    %v344 = vadd.f32 %v342, 1.0
    %v345 = vrcp.pop %v343
    %v346 = vmul.f32 %v343, %v345
    %v347 = vsub.f32 1.0, %v346
    %v348 = vmul.f32 %v345, %v347
    %v349 = vadd.f32 %v345, %v348
    %vm350 = vweird.f32 %v343
    %vm351 = vweird.f32 %v345
    %vm352 = vmor %vm350, %vm351
    %v353 = vsel %vm352, %v345, %v349
    %v354 = vand.u32 2147483647, %v343
    %vm355 = vcmp.eq.f32.partialorder %v354, 8.507059e+37
    %v356 = vand.u32 %v343, 2147483648
    %v357 = vor.u32 1.1754944e-38, %v356
    %v358 = vsel %vm355, %v357, %v353
    %v359 = vmul.f32 1.0, %v358
    %v360 = vrcp.pop %v344
    %v361 = vmul.f32 %v344, %v360
    %v362 = vsub.f32 1.0, %v361
    %v363 = vmul.f32 %v360, %v362
    %v364 = vadd.f32 %v360, %v363
    %vm365 = vweird.f32 %v344
    %vm366 = vweird.f32 %v360
    %vm367 = vmor %vm365, %vm366
    %v368 = vsel %vm367, %v360, %v364
    %v369 = vand.u32 2147483647, %v344
    %vm370 = vcmp.eq.f32.partialorder %v369, 8.507059e+37
    %v371 = vand.u32 %v344, 2147483648
    %v372 = vor.u32 1.1754944e-38, %v371
    %v373 = vsel %vm370, %v372, %v368
    %v374 = vmul.f32 1.0, %v373
    %v375 = vadd.f32 %v327, %v137
    %v377 = vrot.slane %v375, 6
    %v378 = vrot.slane %v375, 7
    %379 = vrot.lane.b32.xlu0 %v377, 64
    %v380 = vpop.permute.xlu0 %379
    %381 = vrot.lane.b32.xlu0 %v378, 64
    %v382 = vpop.permute.xlu0 %381
    %v385 = vmul.f32 %v359, %v380
    %v386 = vmul.f32 %v374, %v382
    %389 = vrot.lane.b32.xlu0 %v385, 64
    %v390 = vpop.permute.xlu0 %389
    %391 = vrot.lane.b32.xlu0 %v386, 64
    %v392 = vpop.permute.xlu0 %391
    %v395 = vadd.f32 %v60, %v390
    %v396 = vadd.f32 %v62, %v392
    %v397 = vtanh.pop %v395
    %v398 = vtanh.pop %v396
    %v399 = vsub.f32 1.0, %v359
    %v400 = vsub.f32 1.0, %v374
    %403 = vrot.lane.b32.xlu0 %v397, 96
    %v404 = vpop.permute.xlu0 %403
    %405 = vrot.lane.b32.xlu0 %v398, 96
    %v406 = vpop.permute.xlu0 %405
    %v409 = vmul.f32 %v399, %v404
    %v410 = vmul.f32 %v400, %v406
    %v413 = vrot.slane %v301, 7
    %v414 = vrot.slane %v302, 7
    %v417 = vmul.f32 %v359, %v413
    %v418 = vmul.f32 %v374, %v414
    %v419 = vadd.f32 %v409, %v417
    %v420 = vadd.f32 %v410, %v418
    %v421 = vpack.c.bf16 %v419, %v419
    %v422 = vpack.c.bf16 %v420, %v420
    %v425 = vunpack.c.l.b16 %v421
    %v426 = vunpack.c.l.b16 %v422
    %v427 = vrot.slane %v425, 2
    %v428 = vrot.slane %v426, 1
    %v429 = vsel %vm193, %v428, %v427
    %v430 = vpack.c.b16 %v429, %v429
    %431 = vrot.lane.b32.xlu0 %v430, 96
    %v432 = vpop.permute.xlu0 %431
    %v434 = vsel %vm75, %v432, 0
    %436 = vmatpush.bf16.msra.mxu0 0
    %437 = vmatpush.bf16.msra.mxu0 0
    %438 = vmatpush.bf16.msra.mxu0 0
    %439 = vmatpush.bf16.msra.mxu0 0
    %440 = vmatpush.bf16.msra.mxu0 0
    %441 = vmatpush.bf16.msra.mxu0 0
    %442 = vmatpush.bf16.msra.mxu0 %v69
    %443 = vmatpush.bf16.msra.mxu0 %v68
    %444 = vmatmul.bf16.gmra.mxu0 %v434
    %v445 = vpop.f32.mrf.mxu0
    %v446 = vadd.f32 0.0, %v445
    %v447 = vpop.f32.mrf.mxu0
    %448 = vdwg.mxu0
    %v450 = vrot.slane %v446, 5
    %v451 = vrot.slane %v446, 6
    %v454 = vadd.f32 %v60, %v450
    %v455 = vadd.f32 %v62, %v451
    %v456 = vxor.u32 %v454, 2147483648
    %v457 = vxor.u32 %v455, 2147483648
    %v458 = vmul.f32 %v456, 1.442695
    %v459 = vpow.pop %v458
    %v460 = vmul.f32 %v457, 1.442695
    %v461 = vpow.pop %v460
    %v462 = vadd.f32 %v459, 1.0
    %v463 = vadd.f32 %v461, 1.0
    %v464 = vrcp.pop %v462
    %v465 = vmul.f32 %v462, %v464
    %v466 = vsub.f32 1.0, %v465
    %v467 = vmul.f32 %v464, %v466
    %v468 = vadd.f32 %v464, %v467
    %vm469 = vweird.f32 %v462
    %vm470 = vweird.f32 %v464
    %vm471 = vmor %vm469, %vm470
    %v472 = vsel %vm471, %v464, %v468
    %v473 = vand.u32 2147483647, %v462
    %vm474 = vcmp.eq.f32.partialorder %v473, 8.507059e+37
    %v475 = vand.u32 %v462, 2147483648
    %v476 = vor.u32 1.1754944e-38, %v475
    %v477 = vsel %vm474, %v476, %v472
    %v478 = vmul.f32 1.0, %v477
    %v479 = vrcp.pop %v463
    %v480 = vmul.f32 %v463, %v479
    %v481 = vsub.f32 1.0, %v480
    %v482 = vmul.f32 %v479, %v481
    %v483 = vadd.f32 %v479, %v482
    %vm484 = vweird.f32 %v463
    %vm485 = vweird.f32 %v479
    %vm486 = vmor %vm484, %vm485
    %v487 = vsel %vm486, %v479, %v483
    %v488 = vand.u32 2147483647, %v463
    %vm489 = vcmp.eq.f32.partialorder %v488, 8.507059e+37
    %v490 = vand.u32 %v463, 2147483648
    %v491 = vor.u32 1.1754944e-38, %v490
    %v492 = vsel %vm489, %v491, %v487
    %v493 = vmul.f32 1.0, %v492
    %v494 = vadd.f32 %v446, %v137
    %v496 = vrot.slane %v494, 5
    %v497 = vrot.slane %v494, 6
    %498 = vrot.lane.b32.xlu0 %v496, 64
    %v499 = vpop.permute.xlu0 %498
    %500 = vrot.lane.b32.xlu0 %v497, 64
    %v501 = vpop.permute.xlu0 %500
    %v504 = vmul.f32 %v478, %v499
    %v505 = vmul.f32 %v493, %v501
    %508 = vrot.lane.b32.xlu0 %v504, 64
    %v509 = vpop.permute.xlu0 %508
    %510 = vrot.lane.b32.xlu0 %v505, 64
    %v511 = vpop.permute.xlu0 %510
    %v514 = vadd.f32 %v60, %v509
    %v515 = vadd.f32 %v62, %v511
    %v516 = vtanh.pop %v514
    %v517 = vtanh.pop %v515
    %v518 = vsub.f32 1.0, %v478
    %v519 = vsub.f32 1.0, %v493
    %522 = vrot.lane.b32.xlu0 %v516, 96
    %v523 = vpop.permute.xlu0 %522
    %524 = vrot.lane.b32.xlu0 %v517, 96
    %v525 = vpop.permute.xlu0 %524
    %v528 = vmul.f32 %v518, %v523
    %v529 = vmul.f32 %v519, %v525
    %v532 = vrot.slane %v419, 7
    %v533 = vrot.slane %v420, 7
    %v536 = vmul.f32 %v478, %v532
    %v537 = vmul.f32 %v493, %v533
    %v538 = vadd.f32 %v528, %v536
    %v539 = vadd.f32 %v529, %v537
    %v540 = vpack.c.bf16 %v538, %v538
    %v541 = vpack.c.bf16 %v539, %v539
    %v544 = vunpack.c.l.b16 %v540
    %v545 = vunpack.c.l.b16 %v541
    %v546 = vrot.slane %v544, 3
    %v547 = vrot.slane %v545, 2
    %v548 = vsel %vm193, %v547, %v546
    %v549 = vpack.c.b16 %v548, %v548
    %550 = vrot.lane.b32.xlu0 %v549, 96
    %v551 = vpop.permute.xlu0 %550
    %v553 = vsel %vm75, %v551, 0
    %555 = vmatpush.bf16.msra.mxu0 0
    %556 = vmatpush.bf16.msra.mxu0 0
    %557 = vmatpush.bf16.msra.mxu0 0
    %558 = vmatpush.bf16.msra.mxu0 0
    %559 = vmatpush.bf16.msra.mxu0 0
    %560 = vmatpush.bf16.msra.mxu0 0
    %561 = vmatpush.bf16.msra.mxu0 %v69
    %562 = vmatpush.bf16.msra.mxu0 %v68
    %563 = vmatmul.bf16.gmra.mxu0 %v553
    %v564 = vpop.f32.mrf.mxu0
    %v565 = vadd.f32 0.0, %v564
    %v566 = vpop.f32.mrf.mxu0
    %567 = vdwg.mxu0
    %v569 = vrot.slane %v565, 4
    %v570 = vrot.slane %v565, 5
    %v573 = vadd.f32 %v60, %v569
    %v574 = vadd.f32 %v62, %v570
    %v575 = vxor.u32 %v573, 2147483648
    %v576 = vxor.u32 %v574, 2147483648
    %v577 = vmul.f32 %v575, 1.442695
    %v578 = vpow.pop %v577
    %v579 = vmul.f32 %v576, 1.442695
    %v580 = vpow.pop %v579
    %v581 = vadd.f32 %v578, 1.0
    %v582 = vadd.f32 %v580, 1.0
    %v583 = vrcp.pop %v581
    %v584 = vmul.f32 %v581, %v583
    %v585 = vsub.f32 1.0, %v584
    %v586 = vmul.f32 %v583, %v585
    %v587 = vadd.f32 %v583, %v586
    %vm588 = vweird.f32 %v581
    %vm589 = vweird.f32 %v583
    %vm590 = vmor %vm588, %vm589
    %v591 = vsel %vm590, %v583, %v587
    %v592 = vand.u32 2147483647, %v581
    %vm593 = vcmp.eq.f32.partialorder %v592, 8.507059e+37
    %v594 = vand.u32 %v581, 2147483648
    %v595 = vor.u32 1.1754944e-38, %v594
    %v596 = vsel %vm593, %v595, %v591
    %v597 = vmul.f32 1.0, %v596
    %v598 = vrcp.pop %v582
    %v599 = vmul.f32 %v582, %v598
    %v600 = vsub.f32 1.0, %v599
    %v601 = vmul.f32 %v598, %v600
    %v602 = vadd.f32 %v598, %v601
    %vm603 = vweird.f32 %v582
    %vm604 = vweird.f32 %v598
    %vm605 = vmor %vm603, %vm604
    %v606 = vsel %vm605, %v598, %v602
    %v607 = vand.u32 2147483647, %v582
    %vm608 = vcmp.eq.f32.partialorder %v607, 8.507059e+37
    %v609 = vand.u32 %v582, 2147483648
    %v610 = vor.u32 1.1754944e-38, %v609
    %v611 = vsel %vm608, %v610, %v606
    %v612 = vmul.f32 1.0, %v611
    %v613 = vadd.f32 %v565, %v137
    %v615 = vrot.slane %v613, 4
    %v616 = vrot.slane %v613, 5
    %617 = vrot.lane.b32.xlu0 %v615, 64
    %v618 = vpop.permute.xlu0 %617
    %619 = vrot.lane.b32.xlu0 %v616, 64
    %v620 = vpop.permute.xlu0 %619
    %v623 = vmul.f32 %v597, %v618
    %v624 = vmul.f32 %v612, %v620
    %627 = vrot.lane.b32.xlu0 %v623, 64
    %v628 = vpop.permute.xlu0 %627
    %629 = vrot.lane.b32.xlu0 %v624, 64
    %v630 = vpop.permute.xlu0 %629
    %v633 = vadd.f32 %v60, %v628
    %v634 = vadd.f32 %v62, %v630
    %v635 = vtanh.pop %v633
    %v636 = vtanh.pop %v634
    %v637 = vsub.f32 1.0, %v597
    %v638 = vsub.f32 1.0, %v612
    %641 = vrot.lane.b32.xlu0 %v635, 96
    %v642 = vpop.permute.xlu0 %641
    %643 = vrot.lane.b32.xlu0 %v636, 96
    %v644 = vpop.permute.xlu0 %643
    %v647 = vmul.f32 %v637, %v642
    %v648 = vmul.f32 %v638, %v644
    %v651 = vrot.slane %v538, 7
    %v652 = vrot.slane %v539, 7
    %v655 = vmul.f32 %v597, %v651
    %v656 = vmul.f32 %v612, %v652
    %v657 = vadd.f32 %v647, %v655
    %v658 = vadd.f32 %v648, %v656
    %v659 = vpack.c.bf16 %v657, %v657
    %v660 = vpack.c.bf16 %v658, %v658
    %v663 = vunpack.c.l.b16 %v659
    %v664 = vunpack.c.l.b16 %v660
    %v665 = vrot.slane %v663, 4
    %v666 = vrot.slane %v664, 3
    %v667 = vsel %vm193, %v666, %v665
    %v668 = vpack.c.b16 %v667, %v667
    %669 = vrot.lane.b32.xlu0 %v668, 96
    %v670 = vpop.permute.xlu0 %669
    %v672 = vsel %vm75, %v670, 0
    %674 = vmatpush.bf16.msra.mxu0 0
    %675 = vmatpush.bf16.msra.mxu0 0
    %676 = vmatpush.bf16.msra.mxu0 0
    %677 = vmatpush.bf16.msra.mxu0 0
    %678 = vmatpush.bf16.msra.mxu0 0
    %679 = vmatpush.bf16.msra.mxu0 0
    %680 = vmatpush.bf16.msra.mxu0 %v69
    %681 = vmatpush.bf16.msra.mxu0 %v68
    %682 = vmatmul.bf16.gmra.mxu0 %v672
    %v683 = vpop.f32.mrf.mxu0
    %v684 = vadd.f32 0.0, %v683
    %v685 = vpop.f32.mrf.mxu0
    %686 = vdwg.mxu0
    %v688 = vrot.slane %v684, 3
    %v689 = vrot.slane %v684, 4
    %v692 = vadd.f32 %v60, %v688
    %v693 = vadd.f32 %v62, %v689
    %v694 = vxor.u32 %v692, 2147483648
    %v695 = vxor.u32 %v693, 2147483648
    %v696 = vmul.f32 %v694, 1.442695
    %v697 = vpow.pop %v696
    %v698 = vmul.f32 %v695, 1.442695
    %v699 = vpow.pop %v698
    %v700 = vadd.f32 %v697, 1.0
    %v701 = vadd.f32 %v699, 1.0
    %v702 = vrcp.pop %v700
    %v703 = vmul.f32 %v700, %v702
    %v704 = vsub.f32 1.0, %v703
    %v705 = vmul.f32 %v702, %v704
    %v706 = vadd.f32 %v702, %v705
    %vm707 = vweird.f32 %v700
    %vm708 = vweird.f32 %v702
    %vm709 = vmor %vm707, %vm708
    %v710 = vsel %vm709, %v702, %v706
    %v711 = vand.u32 2147483647, %v700
    %vm712 = vcmp.eq.f32.partialorder %v711, 8.507059e+37
    %v713 = vand.u32 %v700, 2147483648
    %v714 = vor.u32 1.1754944e-38, %v713
    %v715 = vsel %vm712, %v714, %v710
    %v716 = vmul.f32 1.0, %v715
    %v717 = vrcp.pop %v701
    %v718 = vmul.f32 %v701, %v717
    %v719 = vsub.f32 1.0, %v718
    %v720 = vmul.f32 %v717, %v719
    %v721 = vadd.f32 %v717, %v720
    %vm722 = vweird.f32 %v701
    %vm723 = vweird.f32 %v717
    %vm724 = vmor %vm722, %vm723
    %v725 = vsel %vm724, %v717, %v721
    %v726 = vand.u32 2147483647, %v701
    %vm727 = vcmp.eq.f32.partialorder %v726, 8.507059e+37
    %v728 = vand.u32 %v701, 2147483648
    %v729 = vor.u32 1.1754944e-38, %v728
    %v730 = vsel %vm727, %v729, %v725
    %v731 = vmul.f32 1.0, %v730
    %v732 = vadd.f32 %v684, %v137
    %v734 = vrot.slane %v732, 3
    %v735 = vrot.slane %v732, 4
    %736 = vrot.lane.b32.xlu0 %v734, 64
    %v737 = vpop.permute.xlu0 %736
    %738 = vrot.lane.b32.xlu0 %v735, 64
    %v739 = vpop.permute.xlu0 %738
    %v742 = vmul.f32 %v716, %v737
    %v743 = vmul.f32 %v731, %v739
    %746 = vrot.lane.b32.xlu0 %v742, 64
    %v747 = vpop.permute.xlu0 %746
    %748 = vrot.lane.b32.xlu0 %v743, 64
    %v749 = vpop.permute.xlu0 %748
    %v752 = vadd.f32 %v60, %v747
    %v753 = vadd.f32 %v62, %v749
    %v754 = vtanh.pop %v752
    %v755 = vtanh.pop %v753
    %v756 = vsub.f32 1.0, %v716
    %v757 = vsub.f32 1.0, %v731
    %760 = vrot.lane.b32.xlu0 %v754, 96
    %v761 = vpop.permute.xlu0 %760
    %762 = vrot.lane.b32.xlu0 %v755, 96
    %v763 = vpop.permute.xlu0 %762
    %v766 = vmul.f32 %v756, %v761
    %v767 = vmul.f32 %v757, %v763
    %v770 = vrot.slane %v657, 7
    %v771 = vrot.slane %v658, 7
    %v774 = vmul.f32 %v716, %v770
    %v775 = vmul.f32 %v731, %v771
    %v776 = vadd.f32 %v766, %v774
    %v777 = vadd.f32 %v767, %v775
    %v778 = vpack.c.bf16 %v776, %v776
    %v779 = vpack.c.bf16 %v777, %v777
    %v782 = vunpack.c.l.b16 %v778
    %v783 = vunpack.c.l.b16 %v779
    %v784 = vrot.slane %v782, 5
    %v785 = vrot.slane %v783, 4
    %v786 = vsel %vm193, %v785, %v784
    %v787 = vpack.c.b16 %v786, %v786
    %788 = vrot.lane.b32.xlu0 %v787, 96
    %v789 = vpop.permute.xlu0 %788
    %v791 = vsel %vm75, %v789, 0
    %793 = vmatpush.bf16.msra.mxu0 0
    %794 = vmatpush.bf16.msra.mxu0 0
    %795 = vmatpush.bf16.msra.mxu0 0
    %796 = vmatpush.bf16.msra.mxu0 0
    %797 = vmatpush.bf16.msra.mxu0 0
    %798 = vmatpush.bf16.msra.mxu0 0
    %799 = vmatpush.bf16.msra.mxu0 %v69
    %800 = vmatpush.bf16.msra.mxu0 %v68
    %801 = vmatmul.bf16.gmra.mxu0 %v791
    %v802 = vpop.f32.mrf.mxu0
    %v803 = vadd.f32 0.0, %v802
    %v804 = vpop.f32.mrf.mxu0
    %805 = vdwg.mxu0
    %v807 = vrot.slane %v803, 2
    %v808 = vrot.slane %v803, 3
    %v811 = vadd.f32 %v60, %v807
    %v812 = vadd.f32 %v62, %v808
    %v813 = vxor.u32 %v811, 2147483648
    %v814 = vxor.u32 %v812, 2147483648
    %v815 = vmul.f32 %v813, 1.442695
    %v816 = vpow.pop %v815
    %v817 = vmul.f32 %v814, 1.442695
    %v818 = vpow.pop %v817
    %v819 = vadd.f32 %v816, 1.0
    %v820 = vadd.f32 %v818, 1.0
    %v821 = vrcp.pop %v819
    %v822 = vmul.f32 %v819, %v821
    %v823 = vsub.f32 1.0, %v822
    %v824 = vmul.f32 %v821, %v823
    %v825 = vadd.f32 %v821, %v824
    %vm826 = vweird.f32 %v819
    %vm827 = vweird.f32 %v821
    %vm828 = vmor %vm826, %vm827
    %v829 = vsel %vm828, %v821, %v825
    %v830 = vand.u32 2147483647, %v819
    %vm831 = vcmp.eq.f32.partialorder %v830, 8.507059e+37
    %v832 = vand.u32 %v819, 2147483648
    %v833 = vor.u32 1.1754944e-38, %v832
    %v834 = vsel %vm831, %v833, %v829
    %v835 = vmul.f32 1.0, %v834
    %v836 = vrcp.pop %v820
    %v837 = vmul.f32 %v820, %v836
    %v838 = vsub.f32 1.0, %v837
    %v839 = vmul.f32 %v836, %v838
    %v840 = vadd.f32 %v836, %v839
    %vm841 = vweird.f32 %v820
    %vm842 = vweird.f32 %v836
    %vm843 = vmor %vm841, %vm842
    %v844 = vsel %vm843, %v836, %v840
    %v845 = vand.u32 2147483647, %v820
    %vm846 = vcmp.eq.f32.partialorder %v845, 8.507059e+37
    %v847 = vand.u32 %v820, 2147483648
    %v848 = vor.u32 1.1754944e-38, %v847
    %v849 = vsel %vm846, %v848, %v844
    %v850 = vmul.f32 1.0, %v849
    %v851 = vadd.f32 %v803, %v137
    %v853 = vrot.slane %v851, 2
    %v854 = vrot.slane %v851, 3
    %855 = vrot.lane.b32.xlu0 %v853, 64
    %v856 = vpop.permute.xlu0 %855
    %857 = vrot.lane.b32.xlu0 %v854, 64
    %v858 = vpop.permute.xlu0 %857
    %v861 = vmul.f32 %v835, %v856
    %v862 = vmul.f32 %v850, %v858
    %865 = vrot.lane.b32.xlu0 %v861, 64
    %v866 = vpop.permute.xlu0 %865
    %867 = vrot.lane.b32.xlu0 %v862, 64
    %v868 = vpop.permute.xlu0 %867
    %v871 = vadd.f32 %v60, %v866
    %v872 = vadd.f32 %v62, %v868
    %v873 = vtanh.pop %v871
    %v874 = vtanh.pop %v872
    %v875 = vsub.f32 1.0, %v835
    %v876 = vsub.f32 1.0, %v850
    %879 = vrot.lane.b32.xlu0 %v873, 96
    %v880 = vpop.permute.xlu0 %879
    %881 = vrot.lane.b32.xlu0 %v874, 96
    %v882 = vpop.permute.xlu0 %881
    %v885 = vmul.f32 %v875, %v880
    %v886 = vmul.f32 %v876, %v882
    %v889 = vrot.slane %v776, 7
    %v890 = vrot.slane %v777, 7
    %v893 = vmul.f32 %v835, %v889
    %v894 = vmul.f32 %v850, %v890
    %v895 = vadd.f32 %v885, %v893
    %v896 = vadd.f32 %v886, %v894
    %v897 = vpack.c.bf16 %v895, %v895
    %v898 = vpack.c.bf16 %v896, %v896
    %v901 = vunpack.c.l.b16 %v897
    %v902 = vunpack.c.l.b16 %v898
    %v903 = vrot.slane %v901, 6
    %v904 = vrot.slane %v902, 5
    %v905 = vsel %vm193, %v904, %v903
    %v906 = vpack.c.b16 %v905, %v905
    %907 = vrot.lane.b32.xlu0 %v906, 96
    %v908 = vpop.permute.xlu0 %907
    %v910 = vsel %vm75, %v908, 0
    %912 = vmatpush.bf16.msra.mxu0 0
    %913 = vmatpush.bf16.msra.mxu0 0
    %914 = vmatpush.bf16.msra.mxu0 0
    %915 = vmatpush.bf16.msra.mxu0 0
    %916 = vmatpush.bf16.msra.mxu0 0
    %917 = vmatpush.bf16.msra.mxu0 0
    %918 = vmatpush.bf16.msra.mxu0 %v69
    %919 = vmatpush.bf16.msra.mxu0 %v68
    %920 = vmatmul.bf16.gmra.mxu0 %v910
    %v921 = vpop.f32.mrf.mxu0
    %v922 = vadd.f32 0.0, %v921
    %v923 = vpop.f32.mrf.mxu0
    %924 = vdwg.mxu0
    %v926 = vrot.slane %v922, 1
    %v927 = vrot.slane %v922, 2
    %v930 = vadd.f32 %v60, %v926
    %v931 = vadd.f32 %v62, %v927
    %v932 = vxor.u32 %v930, 2147483648
    %v933 = vxor.u32 %v931, 2147483648
    %v934 = vmul.f32 %v932, 1.442695
    %v935 = vpow.pop %v934
    %v936 = vmul.f32 %v933, 1.442695
    %v937 = vpow.pop %v936
    %v938 = vadd.f32 %v935, 1.0
    %v939 = vadd.f32 %v937, 1.0
    %v940 = vrcp.pop %v938
    %v941 = vmul.f32 %v938, %v940
    %v942 = vsub.f32 1.0, %v941
    %v943 = vmul.f32 %v940, %v942
    %v944 = vadd.f32 %v940, %v943
    %vm945 = vweird.f32 %v938
    %vm946 = vweird.f32 %v940
    %vm947 = vmor %vm945, %vm946
    %v948 = vsel %vm947, %v940, %v944
    %v949 = vand.u32 2147483647, %v938
    %vm950 = vcmp.eq.f32.partialorder %v949, 8.507059e+37
    %v951 = vand.u32 %v938, 2147483648
    %v952 = vor.u32 1.1754944e-38, %v951
    %v953 = vsel %vm950, %v952, %v948
    %v954 = vmul.f32 1.0, %v953
    %v955 = vrcp.pop %v939
    %v956 = vmul.f32 %v939, %v955
    %v957 = vsub.f32 1.0, %v956
    %v958 = vmul.f32 %v955, %v957
    %v959 = vadd.f32 %v955, %v958
    %vm960 = vweird.f32 %v939
    %vm961 = vweird.f32 %v955
    %vm962 = vmor %vm960, %vm961
    %v963 = vsel %vm962, %v955, %v959
    %v964 = vand.u32 2147483647, %v939
    %vm965 = vcmp.eq.f32.partialorder %v964, 8.507059e+37
    %v966 = vand.u32 %v939, 2147483648
    %v967 = vor.u32 1.1754944e-38, %v966
    %v968 = vsel %vm965, %v967, %v963
    %v969 = vmul.f32 1.0, %v968
    %v970 = vadd.f32 %v922, %v137
    %v972 = vrot.slane %v970, 1
    %v973 = vrot.slane %v970, 2
    %974 = vrot.lane.b32.xlu0 %v972, 64
    %v975 = vpop.permute.xlu0 %974
    %976 = vrot.lane.b32.xlu0 %v973, 64
    %v977 = vpop.permute.xlu0 %976
    %v980 = vmul.f32 %v954, %v975
    %v981 = vmul.f32 %v969, %v977
    %984 = vrot.lane.b32.xlu0 %v980, 64
    %v985 = vpop.permute.xlu0 %984
    %986 = vrot.lane.b32.xlu0 %v981, 64
    %v987 = vpop.permute.xlu0 %986
    %v990 = vadd.f32 %v60, %v985
    %v991 = vadd.f32 %v62, %v987
    %v992 = vtanh.pop %v990
    %v993 = vtanh.pop %v991
    %v994 = vsub.f32 1.0, %v954
    %v995 = vsub.f32 1.0, %v969
    %998 = vrot.lane.b32.xlu0 %v992, 96
    %v999 = vpop.permute.xlu0 %998
    %1000 = vrot.lane.b32.xlu0 %v993, 96
    %v1001 = vpop.permute.xlu0 %1000
    %v1004 = vmul.f32 %v994, %v999
    %v1005 = vmul.f32 %v995, %v1001
    %v1008 = vrot.slane %v895, 7
    %v1009 = vrot.slane %v896, 7
    %v1012 = vmul.f32 %v954, %v1008
    %v1013 = vmul.f32 %v969, %v1009
    %v1014 = vadd.f32 %v1004, %v1012
    %v1015 = vadd.f32 %v1005, %v1013
    %v1018 = vrot.slane %v1015, 7
    %1019 = vrot.lane.b32.xlu0 %v1014, 96
    %v1020 = vpop.permute.xlu0 %1019
    %1021 = vrot.lane.b32.xlu0 %v1018, 96
    %v1022 = vpop.permute.xlu0 %1021
    %vm1025 = vcmask 261127
    %1026 = vst.msk [vmem:[#allocation2 - $0x7] sm:$0x80] %vm1025, %v1020
    %vm1027 = vcmask 253952
    %1028 = vst.msk [vmem:[#allocation2 + $0x1] sm:$0x1] %vm1027, %v1022
    %v1029 = vrot.slane %v301, 1
    %v1030 = vrot.slane %v302, 1
    %v1033 = vrot.slane %v419, 2
    %v1034 = vrot.slane %v420, 2
    %v1037 = vrot.slane %v538, 3
    %v1038 = vrot.slane %v539, 3
    %v1041 = vrot.slane %v657, 4
    %v1042 = vrot.slane %v658, 4
    %v1045 = vrot.slane %v776, 5
    %v1046 = vrot.slane %v777, 5
    %v1049 = vrot.slane %v895, 6
    %v1050 = vrot.slane %v896, 6
    %v1053 = vrot.slane %v1014, 7
    %v1056 = vpack.c.bf16 %v1029, %v1029
    %v1057 = vpack.c.bf16 %v1030, %v1030
    %v1058 = vpack.c.bf16 %v1033, %v1033
    %v1059 = vpack.c.bf16 %v1034, %v1034
    %v1060 = vpack.c.bf16 %v1037, %v1037
    %v1061 = vpack.c.bf16 %v1038, %v1038
    %v1062 = vpack.c.bf16 %v1041, %v1041
    %v1063 = vpack.c.bf16 %v1042, %v1042
    %v1064 = vpack.c.bf16 %v1045, %v1045
    %v1065 = vpack.c.bf16 %v1046, %v1046
    %v1066 = vpack.c.bf16 %v1049, %v1049
    %v1067 = vpack.c.bf16 %v1050, %v1050
    %v1068 = vpack.c.bf16 %v1053, %v1053
    %v1069 = vpack.c.bf16 %v1018, %v1018
    %v1070 = vld [vmem:[%s6] sm:$0xff]
    %v1071 = vld [vmem:[%s6 + $0x8] sm:$0xff]
    %v1072 = vld [vmem:[%s6 + $0x10] sm:$0xff]
    %v1073 = vld [vmem:[%s6 + $0x18] sm:$0xff]
    %v1074 = vpack.c.bf16 %v1071, %v1070
    %v1075 = vpack.c.bf16 %v1073, %v1072
    %v1076 = vld [vmem:[%s7] sm:$0x1]
    %v1078 = vperm.slane %v1076, 0
    %v1094 = vunpack.c.l.b16 %v1056
    %v1095 = vunpack.c.l.b16 %v1057
    %v1096 = vunpack.c.l.b16 %v1058
    %v1097 = vunpack.c.l.b16 %v1059
    %v1098 = vunpack.c.l.b16 %v1060
    %v1099 = vunpack.c.l.b16 %v1061
    %v1100 = vunpack.c.l.b16 %v1062
    %v1101 = vunpack.c.l.b16 %v1063
    %v1102 = vunpack.c.l.b16 %v1064
    %v1103 = vunpack.c.l.b16 %v1065
    %v1104 = vunpack.c.l.b16 %v1066
    %v1105 = vunpack.c.l.b16 %v1067
    %v1106 = vunpack.c.l.b16 %v1068
    %v1107 = vunpack.c.l.b16 %v1069
    %v1108 = vrot.slane %v1094, 6
    %vm1109 = vcmask 1042434
    %v1110 = vsel %vm1109, %v1108, %v194
    %v1111 = vrot.slane %v1095, 5
    %vm1112 = vcmask 1043459
    %v1113 = vsel %vm1112, %v1111, %v1110
    %v1114 = vrot.slane %v1096, 4
    %vm1115 = vcmask 1044484
    %v1116 = vsel %vm1115, %v1114, %v1113
    %v1117 = vrot.slane %v1097, 3
    %vm1118 = vcmask 1045509
    %v1119 = vsel %vm1118, %v1117, %v1116
    %v1120 = vrot.slane %v1098, 2
    %vm1121 = vcmask 1046534
    %v1122 = vsel %vm1121, %v1120, %v1119
    %v1123 = vrot.slane %v1099, 1
    %vm1124 = vcmask 1047559
    %v1125 = vsel %vm1124, %v1123, %v1122
    %v1126 = vrot.slane %v1101, 7
    %v1127 = vsel %vm193, %v1126, %v1100
    %v1128 = vrot.slane %v1102, 6
    %v1129 = vsel %vm1109, %v1128, %v1127
    %v1130 = vrot.slane %v1103, 5
    %v1131 = vsel %vm1112, %v1130, %v1129
    %v1132 = vrot.slane %v1104, 4
    %v1133 = vsel %vm1115, %v1132, %v1131
    %v1134 = vrot.slane %v1105, 3
    %v1135 = vsel %vm1118, %v1134, %v1133
    %v1136 = vrot.slane %v1106, 2
    %v1137 = vsel %vm1121, %v1136, %v1135
    %v1138 = vrot.slane %v1107, 1
    %v1139 = vsel %vm1124, %v1138, %v1137
    %v1140 = vpack.c.b16 %v1139, %v1125
    %1141 = vrot.lane.b32.xlu0 %v1140, 96
    %v1142 = vpop.permute.xlu0 %1141
    %v1144 = vsel %vm75, %v1142, 0
    %1146 = vmatpush.bf16.msra.mxu0 0
    %1147 = vmatpush.bf16.msra.mxu0 0
    %1148 = vmatpush.bf16.msra.mxu0 0
    %1149 = vmatpush.bf16.msra.mxu0 0
    %1150 = vmatpush.bf16.msra.mxu0 0
    %1151 = vmatpush.bf16.msra.mxu0 0
    %1152 = vmatpush.bf16.msra.mxu0 %v1075
    %1153 = vmatpush.bf16.msra.mxu0 %v1074
    %1154 = vmatmul.bf16.gmra.mxu0 %v1144
    %v1155 = vpop.f32.mrf.mxu0
    %v1156 = vadd.f32 %v1078, %v1155
    %v1157 = vpop.f32.mrf.mxu0
    %v1158 = vadd.f32 %v1078, %v1157
    %1159 = vdwg.mxu0
    %v1162 = vrot.slane %v1156, 2
    %v1163 = vrot.slane %v1156, 4
    %v1164 = vrot.slane %v1156, 6
    %v1165 = vrot.slane %v1158, 2
    %v1166 = vrot.slane %v1158, 4
    %v1167 = vrot.slane %v1158, 6
    %v1174 = vrot.slane %v1162, 4
    %vm1175 = vcmask 1047556
    %v1176 = vsel %vm1175, %v1174, %v1156
    %v1178 = vunpack.c.l.s4 1934713408
    %v1179 = vunpack.c.0.s8 %v1178
    %v1180 = vperm.slane %v1176, %v1179
    %v1181 = vrot.slane %v1180, 4
    %v1182 = vsel %vm1175, 0.0, %v1181
    %v1183 = vrot.slane %v1164, 4
    %v1184 = vsel %vm1175, %v1183, %v1163
    %v1186 = vunpack.c.l.s4 1934713408
    %v1187 = vunpack.c.0.s8 %v1186
    %v1188 = vperm.slane %v1184, %v1187
    %v1189 = vrot.slane %v1188, 4
    %v1190 = vsel %vm1175, 0.0, %v1189
    %v1191 = vrot.slane %v1165, 4
    %v1192 = vsel %vm1175, %v1191, %v1158
    %v1194 = vunpack.c.l.s4 1934713408
    %v1195 = vunpack.c.0.s8 %v1194
    %v1196 = vperm.slane %v1192, %v1195
    %v1197 = vrot.slane %v1196, 4
    %v1198 = vsel %vm1175, 0.0, %v1197
    %v1199 = vrot.slane %v1167, 4
    %v1200 = vsel %vm1175, %v1199, %v1166
    %v1202 = vunpack.c.l.s4 1934713408
    %v1203 = vunpack.c.0.s8 %v1202
    %v1204 = vperm.slane %v1200, %v1203
    %v1205 = vrot.slane %v1204, 4
    %v1206 = vsel %vm1175, 0.0, %v1205
    %1215 = vst [vmem:[#allocation1] ss:$4 sm:$0xff] %v1180
    %s1216 = scalar_lea.vmem [#allocation1], 1
    %1217 = vst [vmem:[%s1216] ss:$4 sm:$0xff] %v1188
    %s1218 = scalar_lea.vmem [#allocation1], 2
    %1219 = vst [vmem:[%s1218] ss:$4 sm:$0xff] %v1196
    %s1220 = scalar_lea.vmem [#allocation1], 3
    %1221 = vst [vmem:[%s1220] ss:$4 sm:$0xff] %v1204
    %v1222 = vld.sshfl [vmem:[#allocation1] sm:$0xff pattern:$0x73625140]
    %s1223 = scalar_lea.vmem [#allocation1], 32
    %1224 = vst [vmem:[%s1223] ss:$4 sm:$0xff] %v1182
    %s1225 = scalar_lea.vmem [#allocation1], 33
    %1226 = vst [vmem:[%s1225] ss:$4 sm:$0xff] %v1190
    %s1227 = scalar_lea.vmem [#allocation1], 34
    %1228 = vst [vmem:[%s1227] ss:$4 sm:$0xff] %v1198
    %s1229 = scalar_lea.vmem [#allocation1], 35
    %1230 = vst [vmem:[%s1229] ss:$4 sm:$0xff] %v1206
    %v1231 = vld.sshfl [vmem:[#allocation1 + $0x20] sm:$0xff pattern:$0x73625140]
    %1234 = vst.msk [vmem:[%s8] sm:$0xff] %vm42, %v1222
    %1235 = vst.msk [vmem:[%s8 + $0x8] sm:$0xff] %vm42, %v1231
    // Predicated region
    $region34: #{tpu_custom_call.1} parent=1 // pred_check
      _
    $region35: #{tpu_custom_call.1} parent=1 // pred_check_branch
      %1237 = sbr.rel (0) target = $region37
    $region36: #{tpu_custom_call.1} parent=1 // pred_region
      _
    $region37: #{tpu_custom_call.1} parent=1 // pred_fallthru
      _
    // Predicated region
    $region38: #{tpu_custom_call.1} parent=1 // pred_check
      _
    $region39: #{tpu_custom_call.1} parent=1 // pred_check_branch
      %1239 = sbr.rel (0) target = $region41
    $region40: #{tpu_custom_call.1} parent=1 // pred_region
      %1241 = vsyncadd [#allocation3], 0
      %s1243 = sshll.u32 [#allocation2], 4
      %s1244 = int_to_ptr.vmem [resolvable:$true] %s1243
      %s1245 = sshll.u32 %s9, 4
      %s1246 = int_to_ptr.hbm [resolvable:$true] %s1245
      %1248 = dma.vmem_to_hbm [thread:$0]  %s1244, 32, %s1246, [#allocation3]
    $region41: #{tpu_custom_call.1} parent=1 // pred_fallthru
      _
    // Predicated region
    $region42: #{tpu_custom_call.1} parent=1 // pred_check
      _
    $region43: #{tpu_custom_call.1} parent=1 // pred_check_branch
      %1250 = sbr.rel (0) target = $region45
    $region44: #{tpu_custom_call.1} parent=1 // pred_region
      _
    $region45: #{tpu_custom_call.1} parent=1 // pred_fallthru
      _
    // Predicated region
    $region46: #{tpu_custom_call.1} parent=1 // pred_check
      _
    $region47: #{tpu_custom_call.1} parent=1 // pred_check_branch
      %1252 = sbr.rel (0) target = $region49
    $region48: #{tpu_custom_call.1} parent=1 // pred_region
      %1254 = dma.done [#allocation3], 32
    $region49: #{tpu_custom_call.1} parent=1 // pred_fallthru
      _
    %1255 = vsyncpa [#allocation3], 1

</llo_original>
